<compile_context>
chip_gen: v5e
topology: v5e:2x2
jax: 0.10.0
libtpu: 0.0.40
codegen_flags: <defaults>
</compile_context>

<pallas_src>
import jax
import jax.numpy as jnp
from jax.experimental import pallas as pl
from jax.experimental.pallas import tpu as pltpu


def _add_conv1x1_kernel(a_ref, b_ref, w_ref, o_ref):
    # a_ref, b_ref : (C_in, T)      f32 activations
    # w_ref        : (C_blk, C_in)  bf16 (pre-cast in the wrapper, resident)
    # o_ref        : (C_blk, T)
    x = (a_ref[...] + b_ref[...]).astype(jnp.bfloat16)        # fused residual add (VPU)
    # 1x1 conv == per-pixel matmul over channels (MXU, f32 accumulation).
    o_ref[...] = jnp.dot(
        w_ref[...], x, preferred_element_type=jnp.float32
    ).astype(o_ref.dtype)


def _num_tensorcores() -> int:
    """Best-effort TensorCores-per-chip; only used to gate the C_out split."""
    try:
        dev = jax.devices()[0]
        n = getattr(dev, "num_cores", None)
        if isinstance(n, int) and n > 0:
            return n
        if "v7" in dev.device_kind.lower():
            return 2
    except Exception:
        pass
    return 1


def _choose_tiling(hw: int) -> tuple:
    """Return (padded_hw, spatial_tile).

    * hw % 128 == 0       -> largest lane-aligned tile dividing hw (unmasked
                             stores, bounded double-buffered VMEM).
    * small, non-aligned  -> single full-extent block (BlockSpec full-dim rule;
                             fine at 14x14).
    * large, non-aligned  -> pad hw up to a multiple of 512 (wrapper pads with
                             zeros, slices the result) so lane-aligned 512-wide
                             tiles keep blocks inside v7x's 64 MiB VMEM.
    """
    if hw % 128 == 0:
        for t in (2048, 1024, 512, 256, 128):
            if hw % t == 0:
                return hw, t
    if hw <= 2048:
        return hw, hw
    hw_pad = ((hw + 511) // 512) * 512
    return hw_pad, 512


def add_conv1x1(x174, x160, weight, *, out_dtype=None):
    """x174, x160: (N, C_in, H, W) NCHW; weight: (C_out, C_in, 1, 1)."""
    N, C_in, H, W = x174.shape
    C_out = weight.shape[0]
    HW = H * W
    out_dtype = x174.dtype if out_dtype is None else out_dtype

    HW_pad, T = _choose_tiling(HW)
    n_t = HW_pad // T

    # Give v7x's second TensorCore work by splitting C_out; single block on
    # 1-TC chips (v5e/v6e) so no extra serial grid step there.
    n_c = 2 if (_num_tensorcores() >= 2 and C_out % 16 == 0) else 1
    C_blk = C_out // n_c

    # Pure reshapes (contiguous NCHW -> (N, C, HW)): no data movement.
    a = x174.reshape(N, C_in, HW)
    b = x160.reshape(N, C_in, HW)
    if HW_pad != HW:
        pad = [(0, 0), (0, 0), (0, HW_pad - HW)]
        a = jnp.pad(a, pad)
        b = jnp.pad(b, pad)
    # Weight is a constant parameter -> pre-cast to bf16 once (folded by XLA).
    w = weight.reshape(C_out, C_in).astype(jnp.bfloat16)

    act_itemsize = jnp.dtype(x174.dtype).itemsize
    out_itemsize = jnp.dtype(out_dtype).itemsize
    cost = pl.CostEstimate(
        flops=2 * N * HW * C_in * C_out + N * C_in * HW,
        transcendentals=0,
        bytes_accessed=(2 * N * C_in * HW) * act_itemsize
        + C_out * C_in * 2
        + N * C_out * HW * out_itemsize,
    )

    out = pl.pallas_call(
        _add_conv1x1_kernel,
        out_shape=jax.ShapeDtypeStruct((N, C_out, HW_pad), out_dtype),
        grid=(N, n_t, n_c),
        in_specs=[
            pl.BlockSpec((None, C_in, T), lambda n, j, c: (n, 0, j)),
            pl.BlockSpec((None, C_in, T), lambda n, j, c: (n, 0, j)),
            # Resident weight slab per C_out block; constant index along n/j.
            pl.BlockSpec((C_blk, C_in), lambda n, j, c: (c, 0)),
        ],
        out_specs=pl.BlockSpec((None, C_blk, T), lambda n, j, c: (n, c, j)),
        compiler_params=pltpu.CompilerParams(
            dimension_semantics=("parallel", "parallel", "parallel"),
        ),
        cost_estimate=cost,
    )(a, b, w)

    if HW_pad != HW:
        out = out[:, :, :HW]
    # (N, C_out, H*W) -> (N, C_out, H, W): free reshape, already NCHW.
    return out.reshape(N, C_out, H, W)


if __name__ == "__main__":
    key = jax.random.PRNGKey(0)
    k1, k2, k3 = jax.random.split(key, 3)

    # Shapes from the module's forward.
    N, C_in, H, W = 1, 96, 14, 14
    C_out = 576

    x174 = jax.random.normal(k1, (N, C_in, H, W), dtype=jnp.float32)
    x160 = jax.random.normal(k2, (N, C_in, H, W), dtype=jnp.float32)
    # Deterministic synthetic weight for Conv2d(96, 576, 1, bias=False).
    weight = jax.random.normal(k3, (C_out, C_in, 1, 1), dtype=jnp.float32) * 0.05

    out = jax.block_until_ready(add_conv1x1(x174, x160, weight))
    assert out.shape == (N, C_out, H, W), out.shape
    assert out.dtype == x174.dtype, out.dtype

    # References.
    x175 = x174 + x160
    w2d = weight.reshape(C_out, C_in)
    # Exact reference for the bf16-fed MXU path (bf16 products are exact in
    # f32; only accumulation order differs).
    ref_bf16 = jnp.einsum(
        "nchw,oc->nohw",
        x175.astype(jnp.bfloat16).astype(jnp.float32),
        w2d.astype(jnp.bfloat16).astype(jnp.float32),
        precision=jax.lax.Precision.HIGHEST,
    )
    ref_f32 = jnp.einsum("nchw,oc->nohw", x175, w2d,
                         precision=jax.lax.Precision.HIGHEST)

    assert jnp.allclose(out, ref_bf16, atol=1e-3, rtol=1e-3), float(
        jnp.max(jnp.abs(out - ref_bf16)))
    assert jnp.allclose(out, ref_f32, atol=6e-2, rtol=6e-2), float(
        jnp.max(jnp.abs(out - ref_f32)))

    print("KERNEL_OK")
</pallas_src>

<mosaic_0001>
module attributes {stable_mosaic.version = 11 : i64} {
  func.func @_add_conv1x1_kernel(%arg0: i32, %arg1: i32, %arg2: i32, %arg3: memref<1x96x196xf32, #tpu.memory_space<vmem>>, %arg4: memref<1x96x196xf32, #tpu.memory_space<vmem>>, %arg5: memref<576x96xbf16, #tpu.memory_space<vmem>>, %arg6: memref<1x576x196xf32, #tpu.memory_space<vmem>>) attributes {dimension_semantics = [#tpu.dimension_semantics<parallel>, #tpu.dimension_semantics<parallel>, #tpu.dimension_semantics<parallel>], iteration_bounds = array<i64: 1, 1, 1>, scalar_prefetch = 0 : i64, scratch_operands = 0 : i64, tpu.core_type = #tpu.core_type<tc>, window_params = [{transform_indices = @transform_0, window_bounds = array<i64: 1, 96, 196>}, {transform_indices = @transform_1, window_bounds = array<i64: 1, 96, 196>}, {transform_indices = @transform_2, window_bounds = array<i64: 576, 96>}, {transform_indices = @transform_3, window_bounds = array<i64: 1, 576, 196>}]} {
    %c0 = arith.constant 0 : index
    %c0_0 = arith.constant 0 : index
    %c0_1 = arith.constant 0 : index
    %0 = vector.load %arg3[%c0, %c0_0, %c0_1] : memref<1x96x196xf32, #tpu.memory_space<vmem>>, vector<1x96x196xf32>
    %1 = vector.shape_cast %0 : vector<1x96x196xf32> to vector<96x196xf32>
    %c0_2 = arith.constant 0 : index
    %c0_3 = arith.constant 0 : index
    %c0_4 = arith.constant 0 : index
    %2 = vector.load %arg4[%c0_2, %c0_3, %c0_4] : memref<1x96x196xf32, #tpu.memory_space<vmem>>, vector<1x96x196xf32>
    %3 = vector.shape_cast %2 : vector<1x96x196xf32> to vector<96x196xf32>
    %4 = arith.addf %1, %3 : vector<96x196xf32>
    %5 = arith.truncf %4 : vector<96x196xf32> to vector<96x196xbf16>
    %c0_5 = arith.constant 0 : index
    %c0_6 = arith.constant 0 : index
    %6 = vector.load %arg5[%c0_5, %c0_6] : memref<576x96xbf16, #tpu.memory_space<vmem>>, vector<576x96xbf16>
    %cst = arith.constant dense<0.000000e+00> : vector<576x196xf32>
    %7 = tpu.matmul %6, %5, %cst {dimension_numbers = #tpu.dot_dimension_numbers<[1], [0], [0], [1], [0, 0, 1, 1], [], []>} : vector<576x96xbf16>, vector<96x196xbf16>, vector<576x196xf32> -> vector<576x196xf32>
    %c0_7 = arith.constant 0 : index
    %c0_8 = arith.constant 0 : index
    %c0_9 = arith.constant 0 : index
    %8 = vector.load %arg6[%c0_7, %c0_8, %c0_9] : memref<1x576x196xf32, #tpu.memory_space<vmem>>, vector<1x576x196xf32>
    %9 = vector.shape_cast %8 : vector<1x576x196xf32> to vector<576x196xf32>
    %10 = vector.shape_cast %7 : vector<576x196xf32> to vector<1x576x196xf32>
    tpu.vector_store %arg6[%c0_7, %c0_8, %c0_9], %10 {strides = array<i32>} : memref<1x576x196xf32, #tpu.memory_space<vmem>>, vector<1x576x196xf32>,
    return
  }
  func.func @transform_0(%arg0: i32, %arg1: i32, %arg2: i32) -> (i32, i32, i32) {
    %c0_i32 = arith.constant 0 : i32
    %c0_i32_0 = arith.constant 0 : i32
    return %arg0, %c0_i32, %arg1 : i32, i32, i32
  }
  func.func @transform_1(%arg0: i32, %arg1: i32, %arg2: i32) -> (i32, i32, i32) {
    %c0_i32 = arith.constant 0 : i32
    %c0_i32_0 = arith.constant 0 : i32
    return %arg0, %c0_i32, %arg1 : i32, i32, i32
  }
  func.func @transform_2(%arg0: i32, %arg1: i32, %arg2: i32) -> (i32, i32) {
    %c0_i32 = arith.constant 0 : i32
    %c0_i32_0 = arith.constant 0 : i32
    return %arg2, %c0_i32 : i32, i32
  }
  func.func @transform_3(%arg0: i32, %arg1: i32, %arg2: i32) -> (i32, i32, i32) {
    %c0_i32 = arith.constant 0 : i32
    return %arg0, %arg2, %arg1 : i32, i32, i32
  }
}

</mosaic_0001>

<llo_original>
// kernel: tpu_custom_call.1
$region0: #{tpu_custom_call.1}
  #allocation0 [shape = 'u32[]', space=smem, size = 0x4, offset = 0x4, fixed_abs, tag = 'smem constant byte address 0x4 - core index']
  #allocation1 [shape = 'u32[72,128]{1,0:T(1,128)}', space=vmem, size = 0x9000, scoped, tag = 'internal scratch']
  %s0 = inlined_call_operand.vmem [shape: f32[1,96,196], index: 0, kind: input, shape index: {}]
  %s1 = inlined_call_operand.vmem [shape: f32[1,96,196], index: 1, kind: input, shape index: {}]
  %s2 = inlined_call_operand.vmem [shape: bf16[576,96], index: 2, kind: input, shape index: {}]
  %s3 = inlined_call_operand.vmem [shape: f32[1,576,196], index: 3, kind: output, shape index: {}]
  %s4 = sld [smem:[#allocation0]]
  $region22: #{tpu_custom_call.1} parent=0
    _
  %s6 = ssub.s32 1, %s4
  %s7 = scalar_select 0, %s6, %s4
  // Predicated region
  $region2: #{tpu_custom_call.1} parent=0 // pred_check
    _
  $region3: #{tpu_custom_call.1} parent=0 // pred_check_branch
    %9 = sbr.rel (0) target = $region5
  $region4: #{tpu_custom_call.1} parent=0 // pred_region
    _
  $region5: #{tpu_custom_call.1} parent=0 // pred_fallthru
    _
  // Predicated region
  $region6: #{tpu_custom_call.1} parent=0 // pred_check
    _
  $region7: #{tpu_custom_call.1} parent=0 // pred_check_branch
    %11 = sbr.rel (0) target = $region9
  $region8: #{tpu_custom_call.1} parent=0 // pred_region
    _
  $region9: #{tpu_custom_call.1} parent=0 // pred_fallthru
    _
  // Predicated region
  $region10: #{tpu_custom_call.1} parent=0 // pred_check
    _
  $region11: #{tpu_custom_call.1} parent=0 // pred_check_branch
    %13 = sbr.rel (0) target = $region13
  $region12: #{tpu_custom_call.1} parent=0 // pred_region
    _
  $region13: #{tpu_custom_call.1} parent=0 // pred_fallthru
    _
  %v15 = vld [vmem:[%s0] sm:$0xff]
  %v16 = vld [vmem:[%s0 + $0x8] sm:$0xff]
  %v17 = vld [vmem:[%s0 + $0x10] sm:$0xff]
  %v18 = vld [vmem:[%s0 + $0x18] sm:$0xff]
  %v19 = vld [vmem:[%s0 + $0x20] sm:$0xff]
  %v20 = vld [vmem:[%s0 + $0x28] sm:$0xff]
  %v21 = vld [vmem:[%s0 + $0x30] sm:$0xff]
  %v22 = vld [vmem:[%s0 + $0x38] sm:$0xff]
  %v23 = vld [vmem:[%s0 + $0x40] sm:$0xff]
  %v24 = vld [vmem:[%s0 + $0x48] sm:$0xff]
  %v25 = vld [vmem:[%s0 + $0x50] sm:$0xff]
  %v26 = vld [vmem:[%s0 + $0x58] sm:$0xff]
  %v27 = vld [vmem:[%s0 + $0x60] sm:$0xff]
  %v28 = vld [vmem:[%s0 + $0x68] sm:$0xff]
  %v29 = vld [vmem:[%s0 + $0x70] sm:$0xff]
  %v30 = vld [vmem:[%s0 + $0x78] sm:$0xff]
  %v31 = vld [vmem:[%s0 + $0x80] sm:$0xff]
  %v32 = vld [vmem:[%s0 + $0x88] sm:$0xff]
  %v33 = vld [vmem:[%s0 + $0x90] sm:$0xff]
  %v34 = vld [vmem:[%s0 + $0x98] sm:$0xff]
  %v35 = vld [vmem:[%s0 + $0xa0] sm:$0xff]
  %v36 = vld [vmem:[%s0 + $0xa8] sm:$0xff]
  %v37 = vld [vmem:[%s0 + $0xb0] sm:$0xff]
  %v38 = vld [vmem:[%s0 + $0xb8] sm:$0xff]
  %v39 = vld [vmem:[%s1] sm:$0xff]
  %v40 = vld [vmem:[%s1 + $0x8] sm:$0xff]
  %v41 = vld [vmem:[%s1 + $0x10] sm:$0xff]
  %v42 = vld [vmem:[%s1 + $0x18] sm:$0xff]
  %v43 = vld [vmem:[%s1 + $0x20] sm:$0xff]
  %v44 = vld [vmem:[%s1 + $0x28] sm:$0xff]
  %v45 = vld [vmem:[%s1 + $0x30] sm:$0xff]
  %v46 = vld [vmem:[%s1 + $0x38] sm:$0xff]
  %v47 = vld [vmem:[%s1 + $0x40] sm:$0xff]
  %v48 = vld [vmem:[%s1 + $0x48] sm:$0xff]
  %v49 = vld [vmem:[%s1 + $0x50] sm:$0xff]
  %v50 = vld [vmem:[%s1 + $0x58] sm:$0xff]
  %v51 = vld [vmem:[%s1 + $0x60] sm:$0xff]
  %v52 = vld [vmem:[%s1 + $0x68] sm:$0xff]
  %v53 = vld [vmem:[%s1 + $0x70] sm:$0xff]
  %v54 = vld [vmem:[%s1 + $0x78] sm:$0xff]
  %v55 = vld [vmem:[%s1 + $0x80] sm:$0xff]
  %v56 = vld [vmem:[%s1 + $0x88] sm:$0xff]
  %v57 = vld [vmem:[%s1 + $0x90] sm:$0xff]
  %v58 = vld [vmem:[%s1 + $0x98] sm:$0xff]
  %v59 = vld [vmem:[%s1 + $0xa0] sm:$0xff]
  %v60 = vld [vmem:[%s1 + $0xa8] sm:$0xff]
  %v61 = vld [vmem:[%s1 + $0xb0] sm:$0xff]
  %v62 = vld [vmem:[%s1 + $0xb8] sm:$0xff]
  %v63 = vadd.f32 %v15, %v39
  %v64 = vadd.f32 %v16, %v40
  %v65 = vadd.f32 %v17, %v41
  %v66 = vadd.f32 %v18, %v42
  %v67 = vadd.f32 %v19, %v43
  %v68 = vadd.f32 %v20, %v44
  %v69 = vadd.f32 %v21, %v45
  %v70 = vadd.f32 %v22, %v46
  %v71 = vadd.f32 %v23, %v47
  %v72 = vadd.f32 %v24, %v48
  %v73 = vadd.f32 %v25, %v49
  %v74 = vadd.f32 %v26, %v50
  %v75 = vadd.f32 %v27, %v51
  %v76 = vadd.f32 %v28, %v52
  %v77 = vadd.f32 %v29, %v53
  %v78 = vadd.f32 %v30, %v54
  %v79 = vadd.f32 %v31, %v55
  %v80 = vadd.f32 %v32, %v56
  %v81 = vadd.f32 %v33, %v57
  %v82 = vadd.f32 %v34, %v58
  %v83 = vadd.f32 %v35, %v59
  %v84 = vadd.f32 %v36, %v60
  %v85 = vadd.f32 %v37, %v61
  %v86 = vadd.f32 %v38, %v62
  %v87 = vpack.c.bf16 %v65, %v63
  %v88 = vpack.c.bf16 %v66, %v64
  %v89 = vpack.c.bf16 %v69, %v67
  %v90 = vpack.c.bf16 %v70, %v68
  %v91 = vpack.c.bf16 %v73, %v71
  %v92 = vpack.c.bf16 %v74, %v72
  %v93 = vpack.c.bf16 %v77, %v75
  %v94 = vpack.c.bf16 %v78, %v76
  %v95 = vpack.c.bf16 %v81, %v79
  %v96 = vpack.c.bf16 %v82, %v80
  %v97 = vpack.c.bf16 %v85, %v83
  %v98 = vpack.c.bf16 %v86, %v84
  %v99 = vld [vmem:[%s2] sm:$0xf]
  %v100 = vld [vmem:[%s2 + $0x4] sm:$0xf]
  %v101 = vld [vmem:[%s2 + $0x8] sm:$0xf]
  %v102 = vld [vmem:[%s2 + $0xc] sm:$0xf]
  %v103 = vld [vmem:[%s2 + $0x10] sm:$0xf]
  %v104 = vld [vmem:[%s2 + $0x14] sm:$0xf]
  %v105 = vld [vmem:[%s2 + $0x18] sm:$0xf]
  %v106 = vld [vmem:[%s2 + $0x1c] sm:$0xf]
  %v107 = vld [vmem:[%s2 + $0x20] sm:$0xf]
  %v108 = vld [vmem:[%s2 + $0x24] sm:$0xf]
  %v109 = vld [vmem:[%s2 + $0x28] sm:$0xf]
  %v110 = vld [vmem:[%s2 + $0x2c] sm:$0xf]
  %v111 = vld [vmem:[%s2 + $0x30] sm:$0xf]
  %v112 = vld [vmem:[%s2 + $0x34] sm:$0xf]
  %v113 = vld [vmem:[%s2 + $0x38] sm:$0xf]
  %v114 = vld [vmem:[%s2 + $0x3c] sm:$0xf]
  %v115 = vld [vmem:[%s2 + $0x40] sm:$0xf]
  %v116 = vld [vmem:[%s2 + $0x44] sm:$0xf]
  %v117 = vld [vmem:[%s2 + $0x48] sm:$0xf]
  %v118 = vld [vmem:[%s2 + $0x4c] sm:$0xf]
  %v119 = vld [vmem:[%s2 + $0x50] sm:$0xf]
  %v120 = vld [vmem:[%s2 + $0x54] sm:$0xf]
  %v121 = vld [vmem:[%s2 + $0x58] sm:$0xf]
  %v122 = vld [vmem:[%s2 + $0x5c] sm:$0xf]
  %v123 = vld [vmem:[%s2 + $0x60] sm:$0xf]
  %v124 = vld [vmem:[%s2 + $0x64] sm:$0xf]
  %v125 = vld [vmem:[%s2 + $0x68] sm:$0xf]
  %v126 = vld [vmem:[%s2 + $0x6c] sm:$0xf]
  %v127 = vld [vmem:[%s2 + $0x70] sm:$0xf]
  %v128 = vld [vmem:[%s2 + $0x74] sm:$0xf]
  %v129 = vld [vmem:[%s2 + $0x78] sm:$0xf]
  %v130 = vld [vmem:[%s2 + $0x7c] sm:$0xf]
  %v131 = vld [vmem:[%s2 + $0x80] sm:$0xf]
  %v132 = vld [vmem:[%s2 + $0x84] sm:$0xf]
  %v133 = vld [vmem:[%s2 + $0x88] sm:$0xf]
  %v134 = vld [vmem:[%s2 + $0x8c] sm:$0xf]
  %v135 = vld [vmem:[%s2 + $0x90] sm:$0xf]
  %v136 = vld [vmem:[%s2 + $0x94] sm:$0xf]
  %v137 = vld [vmem:[%s2 + $0x98] sm:$0xf]
  %v138 = vld [vmem:[%s2 + $0x9c] sm:$0xf]
  %v139 = vld [vmem:[%s2 + $0xa0] sm:$0xf]
  %v140 = vld [vmem:[%s2 + $0xa4] sm:$0xf]
  %v141 = vld [vmem:[%s2 + $0xa8] sm:$0xf]
  %v142 = vld [vmem:[%s2 + $0xac] sm:$0xf]
  %v143 = vld [vmem:[%s2 + $0xb0] sm:$0xf]
  %v144 = vld [vmem:[%s2 + $0xb4] sm:$0xf]
  %v145 = vld [vmem:[%s2 + $0xb8] sm:$0xf]
  %v146 = vld [vmem:[%s2 + $0xbc] sm:$0xf]
  %v147 = vld [vmem:[%s2 + $0xc0] sm:$0xf]
  %v148 = vld [vmem:[%s2 + $0xc4] sm:$0xf]
  %v149 = vld [vmem:[%s2 + $0xc8] sm:$0xf]
  %v150 = vld [vmem:[%s2 + $0xcc] sm:$0xf]
  %v151 = vld [vmem:[%s2 + $0xd0] sm:$0xf]
  %v152 = vld [vmem:[%s2 + $0xd4] sm:$0xf]
  %v153 = vld [vmem:[%s2 + $0xd8] sm:$0xf]
  %v154 = vld [vmem:[%s2 + $0xdc] sm:$0xf]
  %v155 = vld [vmem:[%s2 + $0xe0] sm:$0xf]
  %v156 = vld [vmem:[%s2 + $0xe4] sm:$0xf]
  %v157 = vld [vmem:[%s2 + $0xe8] sm:$0xf]
  %v158 = vld [vmem:[%s2 + $0xec] sm:$0xf]
  %v159 = vld [vmem:[%s2 + $0xf0] sm:$0xf]
  %v160 = vld [vmem:[%s2 + $0xf4] sm:$0xf]
  %v161 = vld [vmem:[%s2 + $0xf8] sm:$0xf]
  %v162 = vld [vmem:[%s2 + $0xfc] sm:$0xf]
  %v163 = vld [vmem:[%s2 + $0x100] sm:$0xf]
  %v164 = vld [vmem:[%s2 + $0x104] sm:$0xf]
  %v165 = vld [vmem:[%s2 + $0x108] sm:$0xf]
  %v166 = vld [vmem:[%s2 + $0x10c] sm:$0xf]
  %v167 = vld [vmem:[%s2 + $0x110] sm:$0xf]
  %v168 = vld [vmem:[%s2 + $0x114] sm:$0xf]
  %v169 = vld [vmem:[%s2 + $0x118] sm:$0xf]
  %v170 = vld [vmem:[%s2 + $0x11c] sm:$0xf]
  %v243 = vunpack.c.l.b16 %v99
  %v244 = vunpack.c.l.b16 %v100
  %v245 = vunpack.c.l.b16 %v101
  %v246 = vunpack.c.l.b16 %v102
  %v247 = vunpack.c.l.b16 %v103
  %v248 = vunpack.c.l.b16 %v104
  %v249 = vunpack.c.l.b16 %v105
  %v250 = vunpack.c.l.b16 %v106
  %v251 = vunpack.c.l.b16 %v107
  %v252 = vunpack.c.l.b16 %v108
  %v253 = vunpack.c.l.b16 %v109
  %v254 = vunpack.c.l.b16 %v110
  %v255 = vunpack.c.l.b16 %v111
  %v256 = vunpack.c.l.b16 %v112
  %v257 = vunpack.c.l.b16 %v113
  %v258 = vunpack.c.l.b16 %v114
  %v259 = vunpack.c.l.b16 %v115
  %v260 = vunpack.c.l.b16 %v116
  %v261 = vunpack.c.l.b16 %v117
  %v262 = vunpack.c.l.b16 %v118
  %v263 = vunpack.c.l.b16 %v119
  %v264 = vunpack.c.l.b16 %v120
  %v265 = vunpack.c.l.b16 %v121
  %v266 = vunpack.c.l.b16 %v122
  %v267 = vunpack.c.l.b16 %v123
  %v268 = vunpack.c.l.b16 %v124
  %v269 = vunpack.c.l.b16 %v125
  %v270 = vunpack.c.l.b16 %v126
  %v271 = vunpack.c.l.b16 %v127
  %v272 = vunpack.c.l.b16 %v128
  %v273 = vunpack.c.l.b16 %v129
  %v274 = vunpack.c.l.b16 %v130
  %v275 = vunpack.c.l.b16 %v131
  %v276 = vunpack.c.l.b16 %v132
  %v277 = vunpack.c.l.b16 %v133
  %v278 = vunpack.c.l.b16 %v134
  %v279 = vunpack.c.l.b16 %v135
  %v280 = vunpack.c.l.b16 %v136
  %v281 = vunpack.c.l.b16 %v137
  %v282 = vunpack.c.l.b16 %v138
  %v283 = vunpack.c.l.b16 %v139
  %v284 = vunpack.c.l.b16 %v140
  %v285 = vunpack.c.l.b16 %v141
  %v286 = vunpack.c.l.b16 %v142
  %v287 = vunpack.c.l.b16 %v143
  %v288 = vunpack.c.l.b16 %v144
  %v289 = vunpack.c.l.b16 %v145
  %v290 = vunpack.c.l.b16 %v146
  %v291 = vunpack.c.l.b16 %v147
  %v292 = vunpack.c.l.b16 %v148
  %v293 = vunpack.c.l.b16 %v149
  %v294 = vunpack.c.l.b16 %v150
  %v295 = vunpack.c.l.b16 %v151
  %v296 = vunpack.c.l.b16 %v152
  %v297 = vunpack.c.l.b16 %v153
  %v298 = vunpack.c.l.b16 %v154
  %v299 = vunpack.c.l.b16 %v155
  %v300 = vunpack.c.l.b16 %v156
  %v301 = vunpack.c.l.b16 %v157
  %v302 = vunpack.c.l.b16 %v158
  %v303 = vunpack.c.l.b16 %v159
  %v304 = vunpack.c.l.b16 %v160
  %v305 = vunpack.c.l.b16 %v161
  %v306 = vunpack.c.l.b16 %v162
  %v307 = vunpack.c.l.b16 %v163
  %v308 = vunpack.c.l.b16 %v164
  %v309 = vunpack.c.l.b16 %v165
  %v310 = vunpack.c.l.b16 %v166
  %v311 = vunpack.c.l.b16 %v167
  %v312 = vunpack.c.l.b16 %v168
  %v313 = vunpack.c.l.b16 %v169
  %v314 = vunpack.c.l.b16 %v170
  %v315 = vpack.c.b16 %v244, %v243
  %v316 = vpack.c.b16 %v246, %v245
  %v317 = vpack.c.b16 %v248, %v247
  %v318 = vpack.c.b16 %v250, %v249
  %v319 = vpack.c.b16 %v252, %v251
  %v320 = vpack.c.b16 %v254, %v253
  %v321 = vpack.c.b16 %v256, %v255
  %v322 = vpack.c.b16 %v258, %v257
  %v323 = vpack.c.b16 %v260, %v259
  %v324 = vpack.c.b16 %v262, %v261
  %v325 = vpack.c.b16 %v264, %v263
  %v326 = vpack.c.b16 %v266, %v265
  %v327 = vpack.c.b16 %v268, %v267
  %v328 = vpack.c.b16 %v270, %v269
  %v329 = vpack.c.b16 %v272, %v271
  %v330 = vpack.c.b16 %v274, %v273
  %v331 = vpack.c.b16 %v276, %v275
  %v332 = vpack.c.b16 %v278, %v277
  %v333 = vpack.c.b16 %v280, %v279
  %v334 = vpack.c.b16 %v282, %v281
  %v335 = vpack.c.b16 %v284, %v283
  %v336 = vpack.c.b16 %v286, %v285
  %v337 = vpack.c.b16 %v288, %v287
  %v338 = vpack.c.b16 %v290, %v289
  %v339 = vpack.c.b16 %v292, %v291
  %v340 = vpack.c.b16 %v294, %v293
  %v341 = vpack.c.b16 %v296, %v295
  %v342 = vpack.c.b16 %v298, %v297
  %v343 = vpack.c.b16 %v300, %v299
  %v344 = vpack.c.b16 %v302, %v301
  %v345 = vpack.c.b16 %v304, %v303
  %v346 = vpack.c.b16 %v306, %v305
  %v347 = vpack.c.b16 %v308, %v307
  %v348 = vpack.c.b16 %v310, %v309
  %v349 = vpack.c.b16 %v312, %v311
  %v350 = vpack.c.b16 %v314, %v313
  %vm351 = vcmask 785408
  %v353 = vsel %vm351, %v315, 0
  %v356 = vsel %vm351, %v316, 0
  %v359 = vsel %vm351, %v317, 0
  %v362 = vsel %vm351, %v318, 0
  %v365 = vsel %vm351, %v319, 0
  %v368 = vsel %vm351, %v320, 0
  %v371 = vsel %vm351, %v321, 0
  %v374 = vsel %vm351, %v322, 0
  %v377 = vsel %vm351, %v323, 0
  %v380 = vsel %vm351, %v324, 0
  %v383 = vsel %vm351, %v325, 0
  %v386 = vsel %vm351, %v326, 0
  %v389 = vsel %vm351, %v327, 0
  %v392 = vsel %vm351, %v328, 0
  %v395 = vsel %vm351, %v329, 0
  %v398 = vsel %vm351, %v330, 0
  %v401 = vsel %vm351, %v331, 0
  %v404 = vsel %vm351, %v332, 0
  %v407 = vsel %vm351, %v333, 0
  %v410 = vsel %vm351, %v334, 0
  %v413 = vsel %vm351, %v335, 0
  %v416 = vsel %vm351, %v336, 0
  %v419 = vsel %vm351, %v337, 0
  %v422 = vsel %vm351, %v338, 0
  %v425 = vsel %vm351, %v339, 0
  %v428 = vsel %vm351, %v340, 0
  %v431 = vsel %vm351, %v341, 0
  %v434 = vsel %vm351, %v342, 0
  %v437 = vsel %vm351, %v343, 0
  %v440 = vsel %vm351, %v344, 0
  %v443 = vsel %vm351, %v345, 0
  %v446 = vsel %vm351, %v346, 0
  %v449 = vsel %vm351, %v347, 0
  %v452 = vsel %vm351, %v348, 0
  %v455 = vsel %vm351, %v349, 0
  %v458 = vsel %vm351, %v350, 0
  %460 = vmatpush.bf16.msra.mxu0 0
  %461 = vmatpush.bf16.msra.mxu0 0
  %462 = vmatpush.bf16.msra.mxu0 %v97
  %463 = vmatpush.bf16.msra.mxu0 %v95
  %464 = vmatpush.bf16.msra.mxu0 %v93
  %465 = vmatpush.bf16.msra.mxu0 %v91
  %466 = vmatpush.bf16.msra.mxu0 %v89
  %467 = vmatpush.bf16.msra.mxu0 %v87
  %468 = vmatmul.bf16.gmra.mxu0 %v353
  %v469 = vpop.f32.mrf.mxu0
  %v470 = vadd.f32 0.0, %v469
  %v471 = vpop.f32.mrf.mxu0
  %v472 = vadd.f32 0.0, %v471
  %473 = vmatmul.bf16.gmra.mxu0 %v356
  %v474 = vpop.f32.mrf.mxu0
  %v475 = vadd.f32 0.0, %v474
  %v476 = vpop.f32.mrf.mxu0
  %v477 = vadd.f32 0.0, %v476
  %478 = vmatmul.bf16.gmra.mxu0 %v359
  %v479 = vpop.f32.mrf.mxu0
  %v480 = vadd.f32 0.0, %v479
  %v481 = vpop.f32.mrf.mxu0
  %v482 = vadd.f32 0.0, %v481
  %483 = vmatmul.bf16.gmra.mxu0 %v362
  %v484 = vpop.f32.mrf.mxu0
  %v485 = vadd.f32 0.0, %v484
  %v486 = vpop.f32.mrf.mxu0
  %v487 = vadd.f32 0.0, %v486
  %488 = vmatmul.bf16.gmra.mxu0 %v365
  %v489 = vpop.f32.mrf.mxu0
  %v490 = vadd.f32 0.0, %v489
  %v491 = vpop.f32.mrf.mxu0
  %v492 = vadd.f32 0.0, %v491
  %493 = vmatmul.bf16.gmra.mxu0 %v368
  %v494 = vpop.f32.mrf.mxu0
  %v495 = vadd.f32 0.0, %v494
  %v496 = vpop.f32.mrf.mxu0
  %v497 = vadd.f32 0.0, %v496
  %498 = vmatmul.bf16.gmra.mxu0 %v371
  %v499 = vpop.f32.mrf.mxu0
  %v500 = vadd.f32 0.0, %v499
  %v501 = vpop.f32.mrf.mxu0
  %v502 = vadd.f32 0.0, %v501
  %503 = vmatmul.bf16.gmra.mxu0 %v374
  %v504 = vpop.f32.mrf.mxu0
  %v505 = vadd.f32 0.0, %v504
  %v506 = vpop.f32.mrf.mxu0
  %v507 = vadd.f32 0.0, %v506
  %508 = vmatmul.bf16.gmra.mxu0 %v377
  %v509 = vpop.f32.mrf.mxu0
  %v510 = vadd.f32 0.0, %v509
  %v511 = vpop.f32.mrf.mxu0
  %v512 = vadd.f32 0.0, %v511
  %513 = vmatmul.bf16.gmra.mxu0 %v380
  %v514 = vpop.f32.mrf.mxu0
  %v515 = vadd.f32 0.0, %v514
  %v516 = vpop.f32.mrf.mxu0
  %v517 = vadd.f32 0.0, %v516
  %518 = vmatmul.bf16.gmra.mxu0 %v383
  %v519 = vpop.f32.mrf.mxu0
  %v520 = vadd.f32 0.0, %v519
  %v521 = vpop.f32.mrf.mxu0
  %v522 = vadd.f32 0.0, %v521
  %523 = vmatmul.bf16.gmra.mxu0 %v386
  %v524 = vpop.f32.mrf.mxu0
  %v525 = vadd.f32 0.0, %v524
  %v526 = vpop.f32.mrf.mxu0
  %v527 = vadd.f32 0.0, %v526
  %528 = vmatmul.bf16.gmra.mxu0 %v389
  %v529 = vpop.f32.mrf.mxu0
  %v530 = vadd.f32 0.0, %v529
  %v531 = vpop.f32.mrf.mxu0
  %v532 = vadd.f32 0.0, %v531
  %533 = vmatmul.bf16.gmra.mxu0 %v392
  %v534 = vpop.f32.mrf.mxu0
  %v535 = vadd.f32 0.0, %v534
  %v536 = vpop.f32.mrf.mxu0
  %v537 = vadd.f32 0.0, %v536
  %538 = vmatmul.bf16.gmra.mxu0 %v395
  %v539 = vpop.f32.mrf.mxu0
  %v540 = vadd.f32 0.0, %v539
  %v541 = vpop.f32.mrf.mxu0
  %v542 = vadd.f32 0.0, %v541
  %543 = vmatmul.bf16.gmra.mxu0 %v398
  %v544 = vpop.f32.mrf.mxu0
  %v545 = vadd.f32 0.0, %v544
  %v546 = vpop.f32.mrf.mxu0
  %v547 = vadd.f32 0.0, %v546
  %548 = vmatmul.bf16.gmra.mxu0 %v401
  %v549 = vpop.f32.mrf.mxu0
  %v550 = vadd.f32 0.0, %v549
  %v551 = vpop.f32.mrf.mxu0
  %v552 = vadd.f32 0.0, %v551
  %553 = vmatmul.bf16.gmra.mxu0 %v404
  %v554 = vpop.f32.mrf.mxu0
  %v555 = vadd.f32 0.0, %v554
  %v556 = vpop.f32.mrf.mxu0
  %v557 = vadd.f32 0.0, %v556
  %558 = vmatmul.bf16.gmra.mxu0 %v407
  %v559 = vpop.f32.mrf.mxu0
  %v560 = vadd.f32 0.0, %v559
  %v561 = vpop.f32.mrf.mxu0
  %v562 = vadd.f32 0.0, %v561
  %563 = vmatmul.bf16.gmra.mxu0 %v410
  %v564 = vpop.f32.mrf.mxu0
  %v565 = vadd.f32 0.0, %v564
  %v566 = vpop.f32.mrf.mxu0
  %v567 = vadd.f32 0.0, %v566
  %568 = vmatmul.bf16.gmra.mxu0 %v413
  %v569 = vpop.f32.mrf.mxu0
  %v570 = vadd.f32 0.0, %v569
  %v571 = vpop.f32.mrf.mxu0
  %v572 = vadd.f32 0.0, %v571
  %573 = vmatmul.bf16.gmra.mxu0 %v416
  %v574 = vpop.f32.mrf.mxu0
  %v575 = vadd.f32 0.0, %v574
  %v576 = vpop.f32.mrf.mxu0
  %v577 = vadd.f32 0.0, %v576
  %578 = vmatmul.bf16.gmra.mxu0 %v419
  %v579 = vpop.f32.mrf.mxu0
  %v580 = vadd.f32 0.0, %v579
  %v581 = vpop.f32.mrf.mxu0
  %v582 = vadd.f32 0.0, %v581
  %583 = vmatmul.bf16.gmra.mxu0 %v422
  %v584 = vpop.f32.mrf.mxu0
  %v585 = vadd.f32 0.0, %v584
  %v586 = vpop.f32.mrf.mxu0
  %v587 = vadd.f32 0.0, %v586
  %588 = vmatmul.bf16.gmra.mxu0 %v425
  %v589 = vpop.f32.mrf.mxu0
  %v590 = vadd.f32 0.0, %v589
  %v591 = vpop.f32.mrf.mxu0
  %v592 = vadd.f32 0.0, %v591
  %593 = vmatmul.bf16.gmra.mxu0 %v428
  %v594 = vpop.f32.mrf.mxu0
  %v595 = vadd.f32 0.0, %v594
  %v596 = vpop.f32.mrf.mxu0
  %v597 = vadd.f32 0.0, %v596
  %598 = vmatmul.bf16.gmra.mxu0 %v431
  %v599 = vpop.f32.mrf.mxu0
  %v600 = vadd.f32 0.0, %v599
  %v601 = vpop.f32.mrf.mxu0
  %v602 = vadd.f32 0.0, %v601
  %603 = vmatmul.bf16.gmra.mxu0 %v434
  %v604 = vpop.f32.mrf.mxu0
  %v605 = vadd.f32 0.0, %v604
  %v606 = vpop.f32.mrf.mxu0
  %v607 = vadd.f32 0.0, %v606
  %608 = vmatmul.bf16.gmra.mxu0 %v437
  %v609 = vpop.f32.mrf.mxu0
  %v610 = vadd.f32 0.0, %v609
  %v611 = vpop.f32.mrf.mxu0
  %v612 = vadd.f32 0.0, %v611
  %613 = vmatmul.bf16.gmra.mxu0 %v440
  %v614 = vpop.f32.mrf.mxu0
  %v615 = vadd.f32 0.0, %v614
  %v616 = vpop.f32.mrf.mxu0
  %v617 = vadd.f32 0.0, %v616
  %618 = vmatmul.bf16.gmra.mxu0 %v443
  %v619 = vpop.f32.mrf.mxu0
  %v620 = vadd.f32 0.0, %v619
  %v621 = vpop.f32.mrf.mxu0
  %v622 = vadd.f32 0.0, %v621
  %623 = vmatmul.bf16.gmra.mxu0 %v446
  %v624 = vpop.f32.mrf.mxu0
  %v625 = vadd.f32 0.0, %v624
  %v626 = vpop.f32.mrf.mxu0
  %v627 = vadd.f32 0.0, %v626
  %628 = vmatmul.bf16.gmra.mxu0 %v449
  %v629 = vpop.f32.mrf.mxu0
  %v630 = vadd.f32 0.0, %v629
  %v631 = vpop.f32.mrf.mxu0
  %v632 = vadd.f32 0.0, %v631
  %633 = vmatmul.bf16.gmra.mxu0 %v452
  %v634 = vpop.f32.mrf.mxu0
  %v635 = vadd.f32 0.0, %v634
  %v636 = vpop.f32.mrf.mxu0
  %v637 = vadd.f32 0.0, %v636
  %638 = vmatmul.bf16.gmra.mxu0 %v455
  %v639 = vpop.f32.mrf.mxu0
  %v640 = vadd.f32 0.0, %v639
  %v641 = vpop.f32.mrf.mxu0
  %v642 = vadd.f32 0.0, %v641
  %643 = vmatmul.bf16.gmra.mxu0 %v458
  %v644 = vpop.f32.mrf.mxu0
  %v645 = vadd.f32 0.0, %v644
  %v646 = vpop.f32.mrf.mxu0
  %v647 = vadd.f32 0.0, %v646
  %648 = vdwg.mxu0
  %649 = vmatpush.bf16.msra.mxu0 0
  %650 = vmatpush.bf16.msra.mxu0 0
  %651 = vmatpush.bf16.msra.mxu0 %v98
  %652 = vmatpush.bf16.msra.mxu0 %v96
  %653 = vmatpush.bf16.msra.mxu0 %v94
  %654 = vmatpush.bf16.msra.mxu0 %v92
  %655 = vmatpush.bf16.msra.mxu0 %v90
  %656 = vmatpush.bf16.msra.mxu0 %v88
  %657 = vmatmul.bf16.gmra.mxu0 %v353
  %v658 = vpop.f32.mrf.mxu0
  %v659 = vadd.f32 0.0, %v658
  %v660 = vpop.f32.mrf.mxu0
  %v661 = vadd.f32 0.0, %v660
  %662 = vmatmul.bf16.gmra.mxu0 %v356
  %v663 = vpop.f32.mrf.mxu0
  %v664 = vadd.f32 0.0, %v663
  %v665 = vpop.f32.mrf.mxu0
  %v666 = vadd.f32 0.0, %v665
  %667 = vmatmul.bf16.gmra.mxu0 %v359
  %v668 = vpop.f32.mrf.mxu0
  %v669 = vadd.f32 0.0, %v668
  %v670 = vpop.f32.mrf.mxu0
  %v671 = vadd.f32 0.0, %v670
  %672 = vmatmul.bf16.gmra.mxu0 %v362
  %v673 = vpop.f32.mrf.mxu0
  %v674 = vadd.f32 0.0, %v673
  %v675 = vpop.f32.mrf.mxu0
  %v676 = vadd.f32 0.0, %v675
  %677 = vmatmul.bf16.gmra.mxu0 %v365
  %v678 = vpop.f32.mrf.mxu0
  %v679 = vadd.f32 0.0, %v678
  %v680 = vpop.f32.mrf.mxu0
  %v681 = vadd.f32 0.0, %v680
  %682 = vmatmul.bf16.gmra.mxu0 %v368
  %v683 = vpop.f32.mrf.mxu0
  %v684 = vadd.f32 0.0, %v683
  %v685 = vpop.f32.mrf.mxu0
  %v686 = vadd.f32 0.0, %v685
  %687 = vmatmul.bf16.gmra.mxu0 %v371
  %v688 = vpop.f32.mrf.mxu0
  %v689 = vadd.f32 0.0, %v688
  %v690 = vpop.f32.mrf.mxu0
  %v691 = vadd.f32 0.0, %v690
  %692 = vmatmul.bf16.gmra.mxu0 %v374
  %v693 = vpop.f32.mrf.mxu0
  %v694 = vadd.f32 0.0, %v693
  %v695 = vpop.f32.mrf.mxu0
  %v696 = vadd.f32 0.0, %v695
  %697 = vmatmul.bf16.gmra.mxu0 %v377
  %v698 = vpop.f32.mrf.mxu0
  %v699 = vadd.f32 0.0, %v698
  %v700 = vpop.f32.mrf.mxu0
  %v701 = vadd.f32 0.0, %v700
  %702 = vmatmul.bf16.gmra.mxu0 %v380
  %v703 = vpop.f32.mrf.mxu0
  %v704 = vadd.f32 0.0, %v703
  %v705 = vpop.f32.mrf.mxu0
  %v706 = vadd.f32 0.0, %v705
  %707 = vmatmul.bf16.gmra.mxu0 %v383
  %v708 = vpop.f32.mrf.mxu0
  %v709 = vadd.f32 0.0, %v708
  %v710 = vpop.f32.mrf.mxu0
  %v711 = vadd.f32 0.0, %v710
  %712 = vmatmul.bf16.gmra.mxu0 %v386
  %v713 = vpop.f32.mrf.mxu0
  %v714 = vadd.f32 0.0, %v713
  %v715 = vpop.f32.mrf.mxu0
  %v716 = vadd.f32 0.0, %v715
  %717 = vmatmul.bf16.gmra.mxu0 %v389
  %v718 = vpop.f32.mrf.mxu0
  %v719 = vadd.f32 0.0, %v718
  %v720 = vpop.f32.mrf.mxu0
  %v721 = vadd.f32 0.0, %v720
  %722 = vmatmul.bf16.gmra.mxu0 %v392
  %v723 = vpop.f32.mrf.mxu0
  %v724 = vadd.f32 0.0, %v723
  %v725 = vpop.f32.mrf.mxu0
  %v726 = vadd.f32 0.0, %v725
  %727 = vmatmul.bf16.gmra.mxu0 %v395
  %v728 = vpop.f32.mrf.mxu0
  %v729 = vadd.f32 0.0, %v728
  %v730 = vpop.f32.mrf.mxu0
  %v731 = vadd.f32 0.0, %v730
  %732 = vmatmul.bf16.gmra.mxu0 %v398
  %v733 = vpop.f32.mrf.mxu0
  %v734 = vadd.f32 0.0, %v733
  %v735 = vpop.f32.mrf.mxu0
  %v736 = vadd.f32 0.0, %v735
  %737 = vmatmul.bf16.gmra.mxu0 %v401
  %v738 = vpop.f32.mrf.mxu0
  %v739 = vadd.f32 0.0, %v738
  %v740 = vpop.f32.mrf.mxu0
  %v741 = vadd.f32 0.0, %v740
  %742 = vmatmul.bf16.gmra.mxu0 %v404
  %v743 = vpop.f32.mrf.mxu0
  %v744 = vadd.f32 0.0, %v743
  %v745 = vpop.f32.mrf.mxu0
  %v746 = vadd.f32 0.0, %v745
  %747 = vmatmul.bf16.gmra.mxu0 %v407
  %v748 = vpop.f32.mrf.mxu0
  %v749 = vadd.f32 0.0, %v748
  %v750 = vpop.f32.mrf.mxu0
  %v751 = vadd.f32 0.0, %v750
  %752 = vmatmul.bf16.gmra.mxu0 %v410
  %v753 = vpop.f32.mrf.mxu0
  %v754 = vadd.f32 0.0, %v753
  %v755 = vpop.f32.mrf.mxu0
  %v756 = vadd.f32 0.0, %v755
  %757 = vmatmul.bf16.gmra.mxu0 %v413
  %v758 = vpop.f32.mrf.mxu0
  %v759 = vadd.f32 0.0, %v758
  %v760 = vpop.f32.mrf.mxu0
  %v761 = vadd.f32 0.0, %v760
  %762 = vmatmul.bf16.gmra.mxu0 %v416
  %v763 = vpop.f32.mrf.mxu0
  %v764 = vadd.f32 0.0, %v763
  %v765 = vpop.f32.mrf.mxu0
  %v766 = vadd.f32 0.0, %v765
  %767 = vmatmul.bf16.gmra.mxu0 %v419
  %v768 = vpop.f32.mrf.mxu0
  %v769 = vadd.f32 0.0, %v768
  %v770 = vpop.f32.mrf.mxu0
  %v771 = vadd.f32 0.0, %v770
  %772 = vmatmul.bf16.gmra.mxu0 %v422
  %v773 = vpop.f32.mrf.mxu0
  %v774 = vadd.f32 0.0, %v773
  %v775 = vpop.f32.mrf.mxu0
  %v776 = vadd.f32 0.0, %v775
  %777 = vmatmul.bf16.gmra.mxu0 %v425
  %v778 = vpop.f32.mrf.mxu0
  %v779 = vadd.f32 0.0, %v778
  %v780 = vpop.f32.mrf.mxu0
  %v781 = vadd.f32 0.0, %v780
  %782 = vmatmul.bf16.gmra.mxu0 %v428
  %v783 = vpop.f32.mrf.mxu0
  %v784 = vadd.f32 0.0, %v783
  %v785 = vpop.f32.mrf.mxu0
  %v786 = vadd.f32 0.0, %v785
  %787 = vmatmul.bf16.gmra.mxu0 %v431
  %v788 = vpop.f32.mrf.mxu0
  %v789 = vadd.f32 0.0, %v788
  %v790 = vpop.f32.mrf.mxu0
  %v791 = vadd.f32 0.0, %v790
  %792 = vmatmul.bf16.gmra.mxu0 %v434
  %v793 = vpop.f32.mrf.mxu0
  %v794 = vadd.f32 0.0, %v793
  %v795 = vpop.f32.mrf.mxu0
  %v796 = vadd.f32 0.0, %v795
  %797 = vmatmul.bf16.gmra.mxu0 %v437
  %v798 = vpop.f32.mrf.mxu0
  %v799 = vadd.f32 0.0, %v798
  %v800 = vpop.f32.mrf.mxu0
  %v801 = vadd.f32 0.0, %v800
  %802 = vmatmul.bf16.gmra.mxu0 %v440
  %v803 = vpop.f32.mrf.mxu0
  %v804 = vadd.f32 0.0, %v803
  %v805 = vpop.f32.mrf.mxu0
  %v806 = vadd.f32 0.0, %v805
  %807 = vmatmul.bf16.gmra.mxu0 %v443
  %v808 = vpop.f32.mrf.mxu0
  %v809 = vadd.f32 0.0, %v808
  %v810 = vpop.f32.mrf.mxu0
  %v811 = vadd.f32 0.0, %v810
  %812 = vmatmul.bf16.gmra.mxu0 %v446
  %v813 = vpop.f32.mrf.mxu0
  %v814 = vadd.f32 0.0, %v813
  %v815 = vpop.f32.mrf.mxu0
  %v816 = vadd.f32 0.0, %v815
  %817 = vmatmul.bf16.gmra.mxu0 %v449
  %v818 = vpop.f32.mrf.mxu0
  %v819 = vadd.f32 0.0, %v818
  %v820 = vpop.f32.mrf.mxu0
  %v821 = vadd.f32 0.0, %v820
  %822 = vmatmul.bf16.gmra.mxu0 %v452
  %v823 = vpop.f32.mrf.mxu0
  %v824 = vadd.f32 0.0, %v823
  %v825 = vpop.f32.mrf.mxu0
  %v826 = vadd.f32 0.0, %v825
  %827 = vmatmul.bf16.gmra.mxu0 %v455
  %v828 = vpop.f32.mrf.mxu0
  %v829 = vadd.f32 0.0, %v828
  %v830 = vpop.f32.mrf.mxu0
  %v831 = vadd.f32 0.0, %v830
  %832 = vmatmul.bf16.gmra.mxu0 %v458
  %v833 = vpop.f32.mrf.mxu0
  %v834 = vadd.f32 0.0, %v833
  %v835 = vpop.f32.mrf.mxu0
  %v836 = vadd.f32 0.0, %v835
  %837 = vdwg.mxu0
  %838 = vst [vmem:[%s3] sm:$0xff] %v470
  %vm839 = vcmask 556032
  %840 = vst.msk [vmem:[%s3 + $0x8] sm:$0xff] %vm839, %v659
  %841 = vst [vmem:[%s3 + $0x10] sm:$0xff] %v472
  %842 = vst.msk [vmem:[%s3 + $0x18] sm:$0xff] %vm839, %v661
  %843 = vst [vmem:[%s3 + $0x20] sm:$0xff] %v475
  %844 = vst.msk [vmem:[%s3 + $0x28] sm:$0xff] %vm839, %v664
  %845 = vst [vmem:[%s3 + $0x30] sm:$0xff] %v477
  %846 = vst.msk [vmem:[%s3 + $0x38] sm:$0xff] %vm839, %v666
  %847 = vst [vmem:[%s3 + $0x40] sm:$0xff] %v480
  %848 = vst.msk [vmem:[%s3 + $0x48] sm:$0xff] %vm839, %v669
  %849 = vst [vmem:[%s3 + $0x50] sm:$0xff] %v482
  %850 = vst.msk [vmem:[%s3 + $0x58] sm:$0xff] %vm839, %v671
  %851 = vst [vmem:[%s3 + $0x60] sm:$0xff] %v485
  %852 = vst.msk [vmem:[%s3 + $0x68] sm:$0xff] %vm839, %v674
  %853 = vst [vmem:[%s3 + $0x70] sm:$0xff] %v487
  %854 = vst.msk [vmem:[%s3 + $0x78] sm:$0xff] %vm839, %v676
  %855 = vst [vmem:[%s3 + $0x80] sm:$0xff] %v490
  %856 = vst.msk [vmem:[%s3 + $0x88] sm:$0xff] %vm839, %v679
  %857 = vst [vmem:[%s3 + $0x90] sm:$0xff] %v492
  %858 = vst.msk [vmem:[%s3 + $0x98] sm:$0xff] %vm839, %v681
  %859 = vst [vmem:[%s3 + $0xa0] sm:$0xff] %v495
  %860 = vst.msk [vmem:[%s3 + $0xa8] sm:$0xff] %vm839, %v684
  %861 = vst [vmem:[%s3 + $0xb0] sm:$0xff] %v497
  %862 = vst.msk [vmem:[%s3 + $0xb8] sm:$0xff] %vm839, %v686
  %863 = vst [vmem:[%s3 + $0xc0] sm:$0xff] %v500
  %864 = vst.msk [vmem:[%s3 + $0xc8] sm:$0xff] %vm839, %v689
  %865 = vst [vmem:[%s3 + $0xd0] sm:$0xff] %v502
  %866 = vst.msk [vmem:[%s3 + $0xd8] sm:$0xff] %vm839, %v691
  %867 = vst [vmem:[%s3 + $0xe0] sm:$0xff] %v505
  %868 = vst.msk [vmem:[%s3 + $0xe8] sm:$0xff] %vm839, %v694
  %869 = vst [vmem:[%s3 + $0xf0] sm:$0xff] %v507
  %870 = vst.msk [vmem:[%s3 + $0xf8] sm:$0xff] %vm839, %v696
  %871 = vst [vmem:[%s3 + $0x100] sm:$0xff] %v510
  %872 = vst.msk [vmem:[%s3 + $0x108] sm:$0xff] %vm839, %v699
  %873 = vst [vmem:[%s3 + $0x110] sm:$0xff] %v512
  %874 = vst.msk [vmem:[%s3 + $0x118] sm:$0xff] %vm839, %v701
  %875 = vst [vmem:[%s3 + $0x120] sm:$0xff] %v515
  %876 = vst.msk [vmem:[%s3 + $0x128] sm:$0xff] %vm839, %v704
  %877 = vst [vmem:[%s3 + $0x130] sm:$0xff] %v517
  %878 = vst.msk [vmem:[%s3 + $0x138] sm:$0xff] %vm839, %v706
  %879 = vst [vmem:[%s3 + $0x140] sm:$0xff] %v520
  %880 = vst.msk [vmem:[%s3 + $0x148] sm:$0xff] %vm839, %v709
  %881 = vst [vmem:[%s3 + $0x150] sm:$0xff] %v522
  %882 = vst.msk [vmem:[%s3 + $0x158] sm:$0xff] %vm839, %v711
  %883 = vst [vmem:[%s3 + $0x160] sm:$0xff] %v525
  %884 = vst.msk [vmem:[%s3 + $0x168] sm:$0xff] %vm839, %v714
  %885 = vst [vmem:[%s3 + $0x170] sm:$0xff] %v527
  %886 = vst.msk [vmem:[%s3 + $0x178] sm:$0xff] %vm839, %v716
  %887 = vst [vmem:[%s3 + $0x180] sm:$0xff] %v530
  %888 = vst.msk [vmem:[%s3 + $0x188] sm:$0xff] %vm839, %v719
  %889 = vst [vmem:[%s3 + $0x190] sm:$0xff] %v532
  %890 = vst.msk [vmem:[%s3 + $0x198] sm:$0xff] %vm839, %v721
  %891 = vst [vmem:[%s3 + $0x1a0] sm:$0xff] %v535
  %892 = vst.msk [vmem:[%s3 + $0x1a8] sm:$0xff] %vm839, %v724
  %893 = vst [vmem:[%s3 + $0x1b0] sm:$0xff] %v537
  %894 = vst.msk [vmem:[%s3 + $0x1b8] sm:$0xff] %vm839, %v726
  %895 = vst [vmem:[%s3 + $0x1c0] sm:$0xff] %v540
  %896 = vst.msk [vmem:[%s3 + $0x1c8] sm:$0xff] %vm839, %v729
  %897 = vst [vmem:[%s3 + $0x1d0] sm:$0xff] %v542
  %898 = vst.msk [vmem:[%s3 + $0x1d8] sm:$0xff] %vm839, %v731
  %899 = vst [vmem:[%s3 + $0x1e0] sm:$0xff] %v545
  %900 = vst.msk [vmem:[%s3 + $0x1e8] sm:$0xff] %vm839, %v734
  %901 = vst [vmem:[%s3 + $0x1f0] sm:$0xff] %v547
  %902 = vst.msk [vmem:[%s3 + $0x1f8] sm:$0xff] %vm839, %v736
  %903 = vst [vmem:[%s3 + $0x200] sm:$0xff] %v550
  %904 = vst.msk [vmem:[%s3 + $0x208] sm:$0xff] %vm839, %v739
  %905 = vst [vmem:[%s3 + $0x210] sm:$0xff] %v552
  %906 = vst.msk [vmem:[%s3 + $0x218] sm:$0xff] %vm839, %v741
  %907 = vst [vmem:[%s3 + $0x220] sm:$0xff] %v555
  %908 = vst.msk [vmem:[%s3 + $0x228] sm:$0xff] %vm839, %v744
  %909 = vst [vmem:[%s3 + $0x230] sm:$0xff] %v557
  %910 = vst.msk [vmem:[%s3 + $0x238] sm:$0xff] %vm839, %v746
  %911 = vst [vmem:[%s3 + $0x240] sm:$0xff] %v560
  %912 = vst.msk [vmem:[%s3 + $0x248] sm:$0xff] %vm839, %v749
  %913 = vst [vmem:[%s3 + $0x250] sm:$0xff] %v562
  %914 = vst.msk [vmem:[%s3 + $0x258] sm:$0xff] %vm839, %v751
  %915 = vst [vmem:[%s3 + $0x260] sm:$0xff] %v565
  %916 = vst.msk [vmem:[%s3 + $0x268] sm:$0xff] %vm839, %v754
  %917 = vst [vmem:[%s3 + $0x270] sm:$0xff] %v567
  %918 = vst.msk [vmem:[%s3 + $0x278] sm:$0xff] %vm839, %v756
  %919 = vst [vmem:[%s3 + $0x280] sm:$0xff] %v570
  %920 = vst.msk [vmem:[%s3 + $0x288] sm:$0xff] %vm839, %v759
  %921 = vst [vmem:[%s3 + $0x290] sm:$0xff] %v572
  %922 = vst.msk [vmem:[%s3 + $0x298] sm:$0xff] %vm839, %v761
  %923 = vst [vmem:[%s3 + $0x2a0] sm:$0xff] %v575
  %924 = vst.msk [vmem:[%s3 + $0x2a8] sm:$0xff] %vm839, %v764
  %925 = vst [vmem:[%s3 + $0x2b0] sm:$0xff] %v577
  %926 = vst.msk [vmem:[%s3 + $0x2b8] sm:$0xff] %vm839, %v766
  %927 = vst [vmem:[%s3 + $0x2c0] sm:$0xff] %v580
  %928 = vst.msk [vmem:[%s3 + $0x2c8] sm:$0xff] %vm839, %v769
  %929 = vst [vmem:[%s3 + $0x2d0] sm:$0xff] %v582
  %930 = vst.msk [vmem:[%s3 + $0x2d8] sm:$0xff] %vm839, %v771
  %931 = vst [vmem:[%s3 + $0x2e0] sm:$0xff] %v585
  %932 = vst.msk [vmem:[%s3 + $0x2e8] sm:$0xff] %vm839, %v774
  %933 = vst [vmem:[%s3 + $0x2f0] sm:$0xff] %v587
  %934 = vst.msk [vmem:[%s3 + $0x2f8] sm:$0xff] %vm839, %v776
  %935 = vst [vmem:[%s3 + $0x300] sm:$0xff] %v590
  %936 = vst.msk [vmem:[%s3 + $0x308] sm:$0xff] %vm839, %v779
  %937 = vst [vmem:[%s3 + $0x310] sm:$0xff] %v592
  %938 = vst.msk [vmem:[%s3 + $0x318] sm:$0xff] %vm839, %v781
  %939 = vst [vmem:[%s3 + $0x320] sm:$0xff] %v595
  %940 = vst.msk [vmem:[%s3 + $0x328] sm:$0xff] %vm839, %v784
  %941 = vst [vmem:[%s3 + $0x330] sm:$0xff] %v597
  %942 = vst.msk [vmem:[%s3 + $0x338] sm:$0xff] %vm839, %v786
  %943 = vst [vmem:[%s3 + $0x340] sm:$0xff] %v600
  %944 = vst.msk [vmem:[%s3 + $0x348] sm:$0xff] %vm839, %v789
  %945 = vst [vmem:[%s3 + $0x350] sm:$0xff] %v602
  %946 = vst.msk [vmem:[%s3 + $0x358] sm:$0xff] %vm839, %v791
  %947 = vst [vmem:[%s3 + $0x360] sm:$0xff] %v605
  %948 = vst.msk [vmem:[%s3 + $0x368] sm:$0xff] %vm839, %v794
  %949 = vst [vmem:[%s3 + $0x370] sm:$0xff] %v607
  %950 = vst.msk [vmem:[%s3 + $0x378] sm:$0xff] %vm839, %v796
  %951 = vst [vmem:[%s3 + $0x380] sm:$0xff] %v610
  %952 = vst.msk [vmem:[%s3 + $0x388] sm:$0xff] %vm839, %v799
  %953 = vst [vmem:[%s3 + $0x390] sm:$0xff] %v612
  %954 = vst.msk [vmem:[%s3 + $0x398] sm:$0xff] %vm839, %v801
  %955 = vst [vmem:[%s3 + $0x3a0] sm:$0xff] %v615
  %956 = vst.msk [vmem:[%s3 + $0x3a8] sm:$0xff] %vm839, %v804
  %957 = vst [vmem:[%s3 + $0x3b0] sm:$0xff] %v617
  %958 = vst.msk [vmem:[%s3 + $0x3b8] sm:$0xff] %vm839, %v806
  %959 = vst [vmem:[%s3 + $0x3c0] sm:$0xff] %v620
  %960 = vst.msk [vmem:[%s3 + $0x3c8] sm:$0xff] %vm839, %v809
  %961 = vst [vmem:[%s3 + $0x3d0] sm:$0xff] %v622
  %962 = vst.msk [vmem:[%s3 + $0x3d8] sm:$0xff] %vm839, %v811
  %963 = vst [vmem:[%s3 + $0x3e0] sm:$0xff] %v625
  %964 = vst.msk [vmem:[%s3 + $0x3e8] sm:$0xff] %vm839, %v814
  %965 = vst [vmem:[%s3 + $0x3f0] sm:$0xff] %v627
  %966 = vst.msk [vmem:[%s3 + $0x3f8] sm:$0xff] %vm839, %v816
  %967 = vst [vmem:[%s3 + $0x400] sm:$0xff] %v630
  %968 = vst.msk [vmem:[%s3 + $0x408] sm:$0xff] %vm839, %v819
  %969 = vst [vmem:[%s3 + $0x410] sm:$0xff] %v632
  %970 = vst.msk [vmem:[%s3 + $0x418] sm:$0xff] %vm839, %v821
  %971 = vst [vmem:[%s3 + $0x420] sm:$0xff] %v635
  %972 = vst.msk [vmem:[%s3 + $0x428] sm:$0xff] %vm839, %v824
  %973 = vst [vmem:[%s3 + $0x430] sm:$0xff] %v637
  %974 = vst.msk [vmem:[%s3 + $0x438] sm:$0xff] %vm839, %v826
  %975 = vst [vmem:[%s3 + $0x440] sm:$0xff] %v640
  %976 = vst.msk [vmem:[%s3 + $0x448] sm:$0xff] %vm839, %v829
  %977 = vst [vmem:[%s3 + $0x450] sm:$0xff] %v642
  %978 = vst.msk [vmem:[%s3 + $0x458] sm:$0xff] %vm839, %v831
  %979 = vst [vmem:[%s3 + $0x460] sm:$0xff] %v645
  %980 = vst.msk [vmem:[%s3 + $0x468] sm:$0xff] %vm839, %v834
  %981 = vst [vmem:[%s3 + $0x470] sm:$0xff] %v647
  %982 = vst.msk [vmem:[%s3 + $0x478] sm:$0xff] %vm839, %v836
  // Predicated region
  $region14: #{tpu_custom_call.1} parent=0 // pred_check
    _
  $region15: #{tpu_custom_call.1} parent=0 // pred_check_branch
    %984 = sbr.rel (0) target = $region17
  $region16: #{tpu_custom_call.1} parent=0 // pred_region
    _
  $region17: #{tpu_custom_call.1} parent=0 // pred_fallthru
    _
  // Predicated region
  $region18: #{tpu_custom_call.1} parent=0 // pred_check
    _
  $region19: #{tpu_custom_call.1} parent=0 // pred_check_branch
    %986 = sbr.rel (0) target = $region21
  $region20: #{tpu_custom_call.1} parent=0 // pred_region
    _
  $region21: #{tpu_custom_call.1} parent=0 // pred_fallthru
    _

</llo_original>
